<compile_context>
chip_gen: v6e
topology: v6e:2x2x1
jax: 0.10.0
libtpu: 0.0.40
codegen_flags: <defaults>
</compile_context>

<pallas_src>
import jax
import jax.numpy as jnp
from jax.experimental import pallas as pl
from jax.experimental.pallas import tpu as pltpu


# -----------------------------------------------------------------------------
# Pallas kernel: one un-gridded step over all T*B rows
# -----------------------------------------------------------------------------
def _vector_field_kernel(z_ref, w_ref, bias_ref, dxdt_ref, o_ref):
    """out = tanh(z @ W + bias) * dxdt      (flat over the H*C lane dim).

    z_ref    : VMEM (M, H)    f32   latent states, M = T*B rows
    w_ref    : VMEM (H, HC)   f32   func weight
    bias_ref : VMEM (1, HC)   f32   func bias
    dxdt_ref : VMEM (M, HC)   f32   precomputed spline derivative, tiled per row
    o_ref    : VMEM (M, HC)   f32   output
    """
    vf = jnp.tanh(
        jnp.dot(z_ref[...], w_ref[...], preferred_element_type=jnp.float32)
        + bias_ref[...]
    )
    o_ref[...] = (vf * dxdt_ref[...]).astype(o_ref.dtype)


# -----------------------------------------------------------------------------
# One-time preparation (amortized over the whole solve)
# -----------------------------------------------------------------------------
def prepare_vector_field(W, bias, hidden, in_channels):
    """Shape the func parameters for the kernel (f32 throughout — see v5e note)."""
    H, C = hidden, in_channels
    HC = H * C
    assert W.shape == (H, HC)
    return {
        "W": W.astype(jnp.float32),
        "bias": bias.reshape(1, HC).astype(jnp.float32),
    }


def _spline_derivative(ts, knots, spline_coefs):
    """X'(t) for each t in ts.  One tiny XLA fusion; returns (T, C) f32."""
    n_knots = knots.shape[0]
    idx = jnp.clip(jnp.searchsorted(knots, ts, side="right") - 1, 0, n_knots - 2)
    tau = (ts - knots[idx])[:, None]                       # (T, 1)
    return (spline_coefs["b"][idx]
            + 2.0 * spline_coefs["c"][idx] * tau
            + 3.0 * spline_coefs["d"][idx] * tau * tau)    # (T, C)


# -----------------------------------------------------------------------------
# Batched wrapper: all T vector-field evaluations in ONE un-gridded pallas_call
# -----------------------------------------------------------------------------
def vector_field_forward_batched(ts, zs, params, knots, spline_coefs,
                                 hidden, in_channels):
    """ts: (T,) f32; zs: (T, B, H) f32; returns (T, B, H, C) f32."""
    T, B, H = zs.shape
    C = in_channels
    HC = H * C
    M = T * B
    W = params["W"]
    bias2d = params["bias"]
    assert H == hidden and W.shape == (H, HC)
    # HC = 128 here keeps output stores lane-dense; non-multiples still work
    # (full-array blocks have no (8,128) divisibility requirement), just slower.

    # --- spline derivative hoisted out of the kernel (tiny wrapper-side fusion) ---
    dxdt_c = _spline_derivative(ts.astype(jnp.float32),
                                knots.astype(jnp.float32), spline_coefs)  # (T, C)
    # column j of the flat (H*C) output corresponds to channel j % C:
    dxdt_hc = jnp.tile(dxdt_c, (1, H))                                    # (T, HC)
    dxdt_full = jnp.broadcast_to(dxdt_hc[:, None, :], (T, B, HC)).reshape(M, HC)

    vmem = pl.BlockSpec(memory_space=pltpu.MemorySpace.VMEM)
    out_flat = pl.pallas_call(
        _vector_field_kernel,
        out_shape=jax.ShapeDtypeStruct((M, HC), jnp.float32),
        in_specs=[vmem, vmem, vmem, vmem],
        out_specs=vmem,
    )(zs.reshape(M, H).astype(jnp.float32), W, bias2d, dxdt_full)

    # metadata-only view back to (T, B, H, C)
    return out_flat.reshape(T, B, H, C)


def vector_field_forward(t, z, params, knots, spline_coefs, hidden, in_channels):
    """Single-evaluation API matching _VectorField.forward(t, z)."""
    ts = jnp.reshape(t, (1,)).astype(jnp.float32)
    out = vector_field_forward_batched(ts, z[None], params, knots, spline_coefs,
                                       hidden, in_channels)
    return out[0]


def diffusion_g(t, z):
    # TODO(synk): g(t, z) (diffusion term, torch.zeros_like(z).unsqueeze(0)) is a
    # trivial zero-fill and not implemented as a Pallas kernel.
    return jnp.zeros_like(z)[None]


# -----------------------------------------------------------------------------
# Pure-JAX reference (mirrors the PyTorch forward exactly, full f32)
# -----------------------------------------------------------------------------
def reference_forward(t, z, spline_coefs, knots, W, bias, hidden, in_channels):
    B, H = z.shape
    C = in_channels
    n_knots = knots.shape[0]
    idx = jnp.clip(jnp.searchsorted(knots, t, side="right") - 1, 0, n_knots - 2)
    tau = t - knots[idx]
    control_gradient = (
        spline_coefs["b"][idx]
        + 2.0 * spline_coefs["c"][idx] * tau
        + 3.0 * spline_coefs["d"][idx] * tau * tau
    )
    vector_field = jnp.tanh(z @ W + bias).reshape(B, H, C)
    return vector_field * control_gradient[None, :]


# -----------------------------------------------------------------------------
# Main
# -----------------------------------------------------------------------------
if __name__ == "__main__":
    B, H, C = 8, 32, 4   # batch, hidden_channels, input_channels (H*C = 128 lanes)
    n_knots = 8
    T = 4                # solver stages / time points batched into one call

    key = jax.random.PRNGKey(0)
    k_z, k_w, k_b, k_cb, k_cc, k_cd = jax.random.split(key, 6)

    zs = jax.random.normal(k_z, (T, B, H), dtype=jnp.float32)
    W = jax.random.normal(k_w, (H, H * C), dtype=jnp.float32) * 0.1
    bias = jax.random.normal(k_b, (H * C,), dtype=jnp.float32) * 0.1

    # Deterministic synthetic natural-cubic-spline derivative coefficients
    # (per interval i: X'(t) = b_i + 2 c_i (t - t_i) + 3 d_i (t - t_i)^2).
    knots = jnp.arange(n_knots, dtype=jnp.float32)
    spline_coefs = {
        "b": jax.random.normal(k_cb, (n_knots - 1, C), dtype=jnp.float32),
        "c": jax.random.normal(k_cc, (n_knots - 1, C), dtype=jnp.float32) * 0.5,
        "d": jax.random.normal(k_cd, (n_knots - 1, C), dtype=jnp.float32) * 0.25,
    }
    ts = jnp.array([0.4, 2.3, 3.75, 6.9], dtype=jnp.float32)

    # One-time preparation (amortized over the whole solve).
    params = prepare_vector_field(W, bias, H, C)

    # Batched evaluation: all T vector-field evaluations in a single pallas_call.
    out = vector_field_forward_batched(ts, zs, params, knots, spline_coefs, H, C)
    out = jax.block_until_ready(out)
    assert out.shape == (T, B, H, C)

    # Full-f32 pipeline -> tight tolerance vs. the pure-f32 reference.
    for s in range(T):
        ref = reference_forward(ts[s], zs[s], spline_coefs, knots, W, bias, H, C)
        assert jnp.allclose(out[s], ref, rtol=1e-4, atol=1e-5), f"mismatch at step {s}"

    # Single-evaluation API (matches _VectorField.forward(t, z)).
    out1 = vector_field_forward(ts[1], zs[1], params, knots, spline_coefs, H, C)
    out1 = jax.block_until_ready(out1)
    ref1 = reference_forward(ts[1], zs[1], spline_coefs, knots, W, bias, H, C)
    assert out1.shape == (B, H, C)
    assert jnp.allclose(out1, ref1, rtol=1e-4, atol=1e-5), "single-eval mismatch"

    print("KERNEL_OK")
</pallas_src>

<mosaic_0001>
module attributes {stable_mosaic.version = 11 : i64} {
  func.func @_vector_field_kernel(%arg0: memref<32x32xf32, #tpu.memory_space<vmem>>, %arg1: memref<32x128xf32, #tpu.memory_space<vmem>>, %arg2: memref<1x128xf32, #tpu.memory_space<vmem>>, %arg3: memref<32x128xf32, #tpu.memory_space<vmem>>, %arg4: memref<32x128xf32, #tpu.memory_space<vmem>>) attributes {dimension_semantics = [], scalar_prefetch = 0 : i64, scratch_operands = 0 : i64, tpu.core_type = #tpu.core_type<tc>} {
    %c0 = arith.constant 0 : index
    %c0_0 = arith.constant 0 : index
    %0 = vector.load %arg0[%c0, %c0_0] : memref<32x32xf32, #tpu.memory_space<vmem>>, vector<32x32xf32>
    %c0_1 = arith.constant 0 : index
    %c0_2 = arith.constant 0 : index
    %1 = vector.load %arg1[%c0_1, %c0_2] : memref<32x128xf32, #tpu.memory_space<vmem>>, vector<32x128xf32>
    %cst = arith.constant dense<0.000000e+00> : vector<32x128xf32>
    %2 = tpu.matmul %0, %1, %cst {dimension_numbers = #tpu.dot_dimension_numbers<[1], [0], [0], [1], [0, 0, 1, 1], [], []>} : vector<32x32xf32>, vector<32x128xf32>, vector<32x128xf32> -> vector<32x128xf32>
    %c0_3 = arith.constant 0 : index
    %c0_4 = arith.constant 0 : index
    %3 = vector.load %arg2[%c0_3, %c0_4] : memref<1x128xf32, #tpu.memory_space<vmem>>, vector<1x128xf32>
    %4 = vector.broadcast %3 : vector<1x128xf32> to vector<32x128xf32>
    %5 = arith.addf %2, %4 : vector<32x128xf32>
    %6 = math.tanh %5 : vector<32x128xf32>
    %c0_5 = arith.constant 0 : index
    %c0_6 = arith.constant 0 : index
    %7 = vector.load %arg3[%c0_5, %c0_6] : memref<32x128xf32, #tpu.memory_space<vmem>>, vector<32x128xf32>
    %8 = arith.mulf %6, %7 : vector<32x128xf32>
    %c0_7 = arith.constant 0 : index
    %c0_8 = arith.constant 0 : index
    %9 = vector.load %arg4[%c0_7, %c0_8] : memref<32x128xf32, #tpu.memory_space<vmem>>, vector<32x128xf32>
    tpu.vector_store %arg4[%c0_7, %c0_8], %8 {strides = array<i32>} : memref<32x128xf32, #tpu.memory_space<vmem>>, vector<32x128xf32>,
    return
  }
}

</mosaic_0001>

<llo_original>
// kernel: tpu_custom_call.1
$region0: #{tpu_custom_call.1}
  #allocation0 [shape = 'u32[]', space=smem, size = 0x4, offset = 0x4, fixed_abs, tag = 'smem constant byte address 0x4 - core index']
  #allocation1 [shape = 'u32[144,128]{1,0:T(1,128)}', space=vmem, size = 0x12000, scoped, tag = 'internal scratch']
  %s0 = inlined_call_operand.hbm [shape: f32[32,32], index: 0, kind: input, shape index: {}]
  %s1 = inlined_call_operand.hbm [shape: f32[32,128], index: 1, kind: input, shape index: {}]
  %s2 = inlined_call_operand.vmem [shape: f32[1,128], index: 2, kind: input, shape index: {}]
  %s3 = inlined_call_operand.hbm [shape: f32[32,128], index: 3, kind: input, shape index: {}]
  %s4 = inlined_call_operand.hbm [shape: f32[32,128], index: 4, kind: output, shape index: {}]
  %s5 = sld [smem:[#allocation0]]
  $region38: #{tpu_custom_call.1} parent=0
    _
  %s7 = ssub.s32 1, %s5
  %s8 = scalar_select 0, %s7, %s5
  $region1: #{tpu_custom_call.1} parent=0
    #allocation2 [shape = 'u8[16384]{0}', space=vmem, size = 0x4000, scoped, tag = 'input window, operand 0, single buffered']
    #allocation3 [shape = 's32[1]{0}', space=sflag, size = 0x4, scoped, tag = 'scoped memory for tpu_custom_call.1']
    #allocation4 [shape = 's32[1]{0}', space=sflag, size = 0x4, scoped, tag = 'scoped memory for tpu_custom_call.1']
    #allocation5 [shape = 'u8[16384]{0}', space=vmem, size = 0x4000, scoped, tag = 'input window, operand 1, single buffered']
    #allocation6 [shape = 's32[1]{0}', space=sflag, size = 0x4, scoped, tag = 'scoped memory for tpu_custom_call.1']
    #allocation7 [shape = 'u8[16384]{0}', space=vmem, size = 0x4000, scoped, tag = 'input window, operand 3, single buffered']
    #allocation8 [shape = 'u8[16384]{0}', space=vmem, size = 0x4000, scoped, tag = 'output window, operand 0, single buffered']
    %9 = vsyncpa [#allocation3], 0
    %10 = vsyncpa [#allocation6], 0
    %11 = vsyncpa [#allocation4], 0
    // Predicated region
    $region2: #{tpu_custom_call.1} parent=1 // pred_check
      _
    $region3: #{tpu_custom_call.1} parent=1 // pred_check_branch
      %13 = sbr.rel (0) target = $region5
    $region4: #{tpu_custom_call.1} parent=1 // pred_region
      %s15 = ssub.s32 512, 512
      %16 = vsyncadd [#allocation3], %s15
      %s17 = sshll.u32 [#allocation2], 4
      %s18 = int_to_ptr.vmem [resolvable:$true] %s17
      %23 = dma.hbm_to_vmem [thread:$0]  %s0, 512, %s18, [#allocation3], 128, 128, 8
    $region5: #{tpu_custom_call.1} parent=1 // pred_fallthru
      _
    // Predicated region
    $region6: #{tpu_custom_call.1} parent=1 // pred_check
      _
    $region7: #{tpu_custom_call.1} parent=1 // pred_check_branch
      %25 = sbr.rel (0) target = $region9
    $region8: #{tpu_custom_call.1} parent=1 // pred_region
      %s27 = ssub.s32 512, 512
      %28 = vsyncadd [#allocation6], %s27
      %s29 = sshll.u32 [#allocation5], 4
      %s30 = int_to_ptr.vmem [resolvable:$true] %s29
      %35 = dma.hbm_to_vmem [thread:$0]  %s1, 512, %s30, [#allocation6], 128, 128, 8
    $region9: #{tpu_custom_call.1} parent=1 // pred_fallthru
      _
    // Predicated region
    $region10: #{tpu_custom_call.1} parent=1 // pred_check
      _
    $region11: #{tpu_custom_call.1} parent=1 // pred_check_branch
      %37 = sbr.rel (0) target = $region13
    $region12: #{tpu_custom_call.1} parent=1 // pred_region
      _
    $region13: #{tpu_custom_call.1} parent=1 // pred_fallthru
      _
    // Predicated region
    $region14: #{tpu_custom_call.1} parent=1 // pred_check
      _
    $region15: #{tpu_custom_call.1} parent=1 // pred_check_branch
      %39 = sbr.rel (0) target = $region17
    $region16: #{tpu_custom_call.1} parent=1 // pred_region
      %s41 = ssub.s32 512, 512
      %42 = vsyncadd [#allocation6], %s41
      %s43 = sshll.u32 [#allocation7], 4
      %s44 = int_to_ptr.vmem [resolvable:$true] %s43
      %49 = dma.hbm_to_vmem [thread:$0]  %s3, 512, %s44, [#allocation6], 128, 128, 8
    $region17: #{tpu_custom_call.1} parent=1 // pred_fallthru
      _
    // Predicated region
    $region18: #{tpu_custom_call.1} parent=1 // pred_check
      _
    $region19: #{tpu_custom_call.1} parent=1 // pred_check_branch
      %51 = sbr.rel (0) target = $region21
    $region20: #{tpu_custom_call.1} parent=1 // pred_region
      %52 = dma.done [#allocation3], 512
    $region21: #{tpu_custom_call.1} parent=1 // pred_fallthru
      _
    // Predicated region
    $region22: #{tpu_custom_call.1} parent=1 // pred_check
      _
    $region23: #{tpu_custom_call.1} parent=1 // pred_check_branch
      %54 = sbr.rel (0) target = $region25
    $region24: #{tpu_custom_call.1} parent=1 // pred_region
      %55 = dma.done [#allocation6], 512
    $region25: #{tpu_custom_call.1} parent=1 // pred_fallthru
      _
    // Predicated region
    $region26: #{tpu_custom_call.1} parent=1 // pred_check
      _
    $region27: #{tpu_custom_call.1} parent=1 // pred_check_branch
      %57 = sbr.rel (0) target = $region29
    $region28: #{tpu_custom_call.1} parent=1 // pred_region
      %58 = dma.done [#allocation6], 512
    $region29: #{tpu_custom_call.1} parent=1 // pred_fallthru
      _
    %v59 = vld [vmem:[#allocation2] sm:$0xff]
    %v60 = vld [vmem:[#allocation2 + $0x8] sm:$0xff]
    %v61 = vld [vmem:[#allocation2 + $0x10] sm:$0xff]
    %v62 = vld [vmem:[#allocation2 + $0x18] sm:$0xff]
    %v63 = vld [vmem:[#allocation5] sm:$0xff]
    %v64 = vld [vmem:[#allocation5 + $0x8] sm:$0xff]
    %v65 = vld [vmem:[#allocation5 + $0x10] sm:$0xff]
    %v66 = vld [vmem:[#allocation5 + $0x18] sm:$0xff]
    %v67 = vld [vmem:[%s2] sm:$0x1]
    %v69 = vlaneseq
    %v70 = vshrl.u32 %v69, 7
    %v71 = vsub.s32 0, %v70
    %v72 = vrot.slane %v67, %v71
    %vm74 = vcmask 261120
    %v76 = vsel %vm74, %v59, 0
    %v79 = vsel %vm74, %v60, 0
    %v82 = vsel %vm74, %v61, 0
    %v85 = vsel %vm74, %v62, 0
    %87 = vmatprep.subr.mxu0 0.0
    %88 = vmatpush1.msra.mxu0 0.0
    %89 = vmatprep.subr.mxu0 0.0
    %90 = vmatpush1.msra.mxu0 0.0
    %91 = vmatprep.subr.mxu0 0.0
    %92 = vmatpush1.msra.mxu0 0.0
    %93 = vmatprep.subr.mxu0 0.0
    %94 = vmatpush1.msra.mxu0 0.0
    %95 = vmatprep.subr.mxu0 0.0
    %96 = vmatpush1.msra.mxu0 0.0
    %97 = vmatprep.subr.mxu0 0.0
    %98 = vmatpush1.msra.mxu0 0.0
    %99 = vmatprep.subr.mxu0 0.0
    %100 = vmatpush1.msra.mxu0 0.0
    %101 = vmatprep.subr.mxu0 0.0
    %102 = vmatpush1.msra.mxu0 0.0
    %103 = vmatprep.subr.mxu0 0.0
    %104 = vmatpush1.msra.mxu0 0.0
    %105 = vmatprep.subr.mxu0 0.0
    %106 = vmatpush1.msra.mxu0 0.0
    %107 = vmatprep.subr.mxu0 0.0
    %108 = vmatpush1.msra.mxu0 0.0
    %109 = vmatprep.subr.mxu0 0.0
    %110 = vmatpush1.msra.mxu0 0.0
    %111 = vmatprep.subr.mxu0 0.0
    %112 = vmatpush1.msra.mxu0 %v66
    %113 = vmatprep.subr.mxu0 0.0
    %114 = vmatpush1.msra.mxu0 %v65
    %115 = vmatprep.subr.mxu0 0.0
    %116 = vmatpush1.msra.mxu0 %v64
    %117 = vmatprep.subr.mxu0 0.0
    %118 = vmatpush1.msra.mxu0 %v63
    %119 = vmatprep.subr.mxu0 0.0
    %120 = vmatpush2.msra.mxu0 0.0
    %121 = vmatprep.subr.mxu0 0.0
    %122 = vmatpush2.msra.mxu0 0.0
    %123 = vmatprep.subr.mxu0 0.0
    %124 = vmatpush2.msra.mxu0 0.0
    %125 = vmatprep.subr.mxu0 0.0
    %126 = vmatpush2.msra.mxu0 0.0
    %127 = vmatprep.subr.mxu0 0.0
    %128 = vmatpush2.msra.mxu0 0.0
    %129 = vmatprep.subr.mxu0 0.0
    %130 = vmatpush2.msra.mxu0 0.0
    %131 = vmatprep.subr.mxu0 0.0
    %132 = vmatpush2.msra.mxu0 0.0
    %133 = vmatprep.subr.mxu0 0.0
    %134 = vmatpush2.msra.mxu0 0.0
    %135 = vmatprep.subr.mxu0 0.0
    %136 = vmatpush2.msra.mxu0 0.0
    %137 = vmatprep.subr.mxu0 0.0
    %138 = vmatpush2.msra.mxu0 0.0
    %139 = vmatprep.subr.mxu0 0.0
    %140 = vmatpush2.msra.mxu0 0.0
    %141 = vmatprep.subr.mxu0 0.0
    %142 = vmatpush2.msra.mxu0 0.0
    %143 = vmatprep.subr.mxu0 0.0
    %144 = vmatpush2.msra.mxu0 0.0
    %145 = vmatprep.subr.mxu0 0.0
    %146 = vmatpush2.msra.mxu0 0.0
    %147 = vmatprep.subr.mxu0 0.0
    %148 = vmatpush2.msra.mxu0 0.0
    %149 = vmatprep.subr.mxu0 0.0
    %150 = vmatpush2.msra.mxu0 0.0
    %151 = vmatprep.mubr.f32.mxu0 0.0
    %152 = vmatmul.mubr.f32.gmra.mxu0 %v76
    %v153 = vpop.f32.mrf.mxu0
    %v154 = vadd.f32 %v72, %v153
    %v155 = vpop.f32.mrf.mxu0
    %156 = vmatprep.mubr.f32.mxu0 0.0
    %157 = vmatmul.mubr.f32.gmra.mxu0 %v79
    %v158 = vpop.f32.mrf.mxu0
    %v159 = vadd.f32 %v72, %v158
    %v160 = vpop.f32.mrf.mxu0
    %161 = vmatprep.mubr.f32.mxu0 0.0
    %162 = vmatmul.mubr.f32.gmra.mxu0 %v82
    %v163 = vpop.f32.mrf.mxu0
    %v164 = vadd.f32 %v72, %v163
    %v165 = vpop.f32.mrf.mxu0
    %166 = vmatprep.mubr.f32.mxu0 0.0
    %167 = vmatmul.mubr.f32.gmra.mxu0 %v85
    %v168 = vpop.f32.mrf.mxu0
    %v169 = vadd.f32 %v72, %v168
    %v170 = vpop.f32.mrf.mxu0
    %171 = vdwg.mxu0
    %v172 = vtanh.pop %v154
    %v173 = vtanh.pop %v159
    %v174 = vtanh.pop %v164
    %v175 = vtanh.pop %v169
    %v176 = vld [vmem:[#allocation7] sm:$0xff]
    %v177 = vld [vmem:[#allocation7 + $0x8] sm:$0xff]
    %v178 = vld [vmem:[#allocation7 + $0x10] sm:$0xff]
    %v179 = vld [vmem:[#allocation7 + $0x18] sm:$0xff]
    %v180 = vmul.f32 %v172, %v176
    %v181 = vmul.f32 %v173, %v177
    %v182 = vmul.f32 %v174, %v178
    %v183 = vmul.f32 %v175, %v179
    %184 = vst [vmem:[#allocation8] sm:$0xff] %v180
    %185 = vst [vmem:[#allocation8 + $0x8] sm:$0xff] %v181
    %186 = vst [vmem:[#allocation8 + $0x10] sm:$0xff] %v182
    %187 = vst [vmem:[#allocation8 + $0x18] sm:$0xff] %v183
    // Predicated region
    $region30: #{tpu_custom_call.1} parent=1 // pred_check
      _
    $region31: #{tpu_custom_call.1} parent=1 // pred_check_branch
      %189 = sbr.rel (0) target = $region33
    $region32: #{tpu_custom_call.1} parent=1 // pred_region
      %s191 = ssub.s32 512, 512
      %192 = vsyncadd [#allocation4], %s191
      %s193 = sshll.u32 [#allocation8], 4
      %s194 = int_to_ptr.vmem [resolvable:$true] %s193
      %199 = dma.vmem_to_hbm [thread:$0]  %s194, 512, %s4, [#allocation4], 128, 128, 8
    $region33: #{tpu_custom_call.1} parent=1 // pred_fallthru
      _
    // Predicated region
    $region34: #{tpu_custom_call.1} parent=1 // pred_check
      _
    $region35: #{tpu_custom_call.1} parent=1 // pred_check_branch
      %201 = sbr.rel (0) target = $region37
    $region36: #{tpu_custom_call.1} parent=1 // pred_region
      %202 = dma.done [#allocation4], 512
    $region37: #{tpu_custom_call.1} parent=1 // pred_fallthru
      _
    %203 = vsyncpa [#allocation3], 1
    %204 = vsyncpa [#allocation6], 1
    %205 = vsyncpa [#allocation4], 1

</llo_original>
